<compile_context>
chip_gen: v7x
topology: tpu7x:2x2x1
jax: 0.10.0
libtpu: 0.0.40
codegen_flags: <defaults>
</compile_context>

<pallas_src>
from functools import partial

import jax
import jax.numpy as jnp
from jax.experimental import pallas as pl
from jax.experimental.pallas import tpu as pltpu

LANE = 128
SUB = 16  # bf16 sublane packing granularity for batch tiles


def dqn_mlp_kernel(x_ref, w1_ref, b1_ref, w2_ref, b2_ref, w3_ref, b3_ref, o_ref):
    # x_ref: (TB, d_in) f32 batch tile; weights bf16; biases f32; output bf16.
    x = x_ref[...].astype(jnp.bfloat16)

    # Linear 1 + ReLU (bf16 matmul, f32 accumulate)
    h1 = jnp.dot(x, w1_ref[...], preferred_element_type=jnp.float32) + b1_ref[...]
    h1 = jnp.maximum(h1, 0.0).astype(jnp.bfloat16)

    # Linear 2 + ReLU
    h2 = jnp.dot(h1, w2_ref[...], preferred_element_type=jnp.float32) + b2_ref[...]
    h2 = jnp.maximum(h2, 0.0).astype(jnp.bfloat16)

    # Linear 3 (output head, lane-padded to 128, no activation)
    out = jnp.dot(h2, w3_ref[...], preferred_element_type=jnp.float32) + b3_ref[...]
    o_ref[...] = out.astype(o_ref.dtype)  # lane-dense bf16 store


def _round_up(n, m):
    return (n + m - 1) // m * m


def prepare_dqn_params(params):
    """One-time weight prep: bf16 cast + lane-pad of the output head.

    Call once and reuse the result across forward calls so the per-call path
    launches no pad/cast kernels over the weights.
    Returns (prepared_dict, d_out).
    """
    w1 = params["w1"].astype(jnp.bfloat16)
    w2 = params["w2"].astype(jnp.bfloat16)
    w3 = params["w3"]
    hd2, d_out = w3.shape
    d_out_p = _round_up(d_out, LANE)

    w3_p = jnp.zeros((hd2, d_out_p), jnp.bfloat16).at[:, :d_out].set(
        w3.astype(jnp.bfloat16))
    b1 = params["b1"].reshape(1, -1).astype(jnp.float32)
    b2 = params["b2"].reshape(1, -1).astype(jnp.float32)
    b3 = params["b3"].reshape(1, -1).astype(jnp.float32)
    b3_p = jnp.zeros((1, d_out_p), jnp.float32).at[:, :d_out].set(b3)

    prepared = {"w1": w1, "b1": b1, "w2": w2, "b2": b2, "w3": w3_p, "b3": b3_p}
    return prepared, d_out


@partial(jax.jit, static_argnames=("d_out", "tile_b"))
def dqn_forward(x, prepared, *, d_out, tile_b=512):
    """x: (B, input_dim) float32. prepared: output of prepare_dqn_params."""
    B, d_in = x.shape
    w1, b1 = prepared["w1"], prepared["b1"]
    w2, b2 = prepared["w2"], prepared["b2"]
    w3, b3 = prepared["w3"], prepared["b3"]
    hd1 = w1.shape[1]
    hd2 = w2.shape[1]
    d_out_p = w3.shape[1]

    # Batch tile: multiple of 16, at most tile_b, no bigger than padded batch.
    b_pad = _round_up(B, SUB)
    tile_eff = min(_round_up(tile_b, SUB), b_pad)
    # Ensure >= 2 grid steps when the batch allows it, so the "parallel" batch
    # axis can be sharded across both TensorCores on v7x (no-op on v5e/v6e).
    if b_pad >= 2 * SUB:
        tile_eff = min(tile_eff, _round_up(b_pad // 2, SUB))
    tile_eff = max(tile_eff, SUB)
    B_p = _round_up(b_pad, tile_eff)

    # Only per-call host-side op: zero-pad the batch if it is not tile-aligned.
    if B_p != B:
        x_in = jnp.zeros((B_p, d_in), x.dtype).at[:B, :].set(x)
    else:
        x_in = x

    grid = (B_p // tile_eff,)

    out = pl.pallas_call(
        dqn_mlp_kernel,
        out_shape=jax.ShapeDtypeStruct((B_p, d_out_p), jnp.bfloat16),
        grid_spec=pltpu.PrefetchScalarGridSpec(
            num_scalar_prefetch=0,
            grid=grid,
            in_specs=[
                pl.BlockSpec((tile_eff, d_in), lambda i: (i, 0)),  # x tile (raw f32)
                pl.BlockSpec((d_in, hd1), lambda i: (0, 0)),       # w1 (full, bf16)
                pl.BlockSpec((1, hd1), lambda i: (0, 0)),          # b1 (f32)
                pl.BlockSpec((hd1, hd2), lambda i: (0, 0)),        # w2 (full, bf16)
                pl.BlockSpec((1, hd2), lambda i: (0, 0)),          # b2 (f32)
                pl.BlockSpec((hd2, d_out_p), lambda i: (0, 0)),    # w3 (lane-padded)
                pl.BlockSpec((1, d_out_p), lambda i: (0, 0)),      # b3 (lane-padded)
            ],
            out_specs=pl.BlockSpec((tile_eff, d_out_p), lambda i: (i, 0)),
        ),
        compiler_params=pltpu.CompilerParams(
            dimension_semantics=("parallel",)
        ),
    )(x_in, w1, b1, w2, b2, w3, b3)

    # Slice off batch/lane padding; return f32 like the PyTorch module.
    return out[:B, :d_out].astype(jnp.float32)


def init_dqn_params(key, input_dim, output_dim, hidden_dim=128, hidden_dim2=256):
    """Deterministic synthetic init (uniform, like PyTorch's default range)."""
    ks = jax.random.split(key, 6)

    def linear(kw, kb, fan_in, fan_out):
        bound = 1.0 / jnp.sqrt(fan_in)
        w = jax.random.uniform(kw, (fan_in, fan_out), jnp.float32, -bound, bound)
        b = jax.random.uniform(kb, (1, fan_out), jnp.float32, -bound, bound)
        return w, b

    w1, b1 = linear(ks[0], ks[1], input_dim, hidden_dim)
    w2, b2 = linear(ks[2], ks[3], hidden_dim, hidden_dim2)
    w3, b3 = linear(ks[4], ks[5], hidden_dim2, output_dim)
    return {"w1": w1, "b1": b1, "w2": w2, "b2": b2, "w3": w3, "b3": b3}


def dqn_reference(x, p):
    h1 = jnp.maximum(x @ p["w1"] + p["b1"], 0.0)
    h2 = jnp.maximum(h1 @ p["w2"] + p["b2"], 0.0)
    return h2 @ p["w3"] + p["b3"]


if __name__ == "__main__":
    key = jax.random.PRNGKey(0)
    k_params, k_x = jax.random.split(key)

    batch, input_dim, output_dim = 16, 32, 8
    params = init_dqn_params(k_params, input_dim, output_dim,
                             hidden_dim=128, hidden_dim2=256)
    x = jax.random.normal(k_x, (batch, input_dim), jnp.float32)

    # Weight prep happens once; forward calls reuse the prepared (bf16/padded)
    # weights with no per-call pad/cast kernels.
    prepared, d_out = prepare_dqn_params(params)

    out = dqn_forward(x, prepared, d_out=d_out)
    out = jax.block_until_ready(out)

    ref = dqn_reference(x, params)
    assert out.shape == (batch, output_dim)
    # bf16 matmul operands / bf16 output store with f32 accumulation ->
    # loosened tolerance vs the f32 reference.
    assert jnp.allclose(out, ref, atol=5e-2, rtol=5e-2)

    print("KERNEL_OK")
</pallas_src>

<mosaic_0001>
module attributes {stable_mosaic.version = 11 : i64} {
  func.func @dqn_mlp_kernel(%arg0: i32, %arg1: memref<16x32xf32, #tpu.memory_space<vmem>>, %arg2: memref<32x128xbf16, #tpu.memory_space<vmem>>, %arg3: memref<1x128xf32, #tpu.memory_space<vmem>>, %arg4: memref<128x256xbf16, #tpu.memory_space<vmem>>, %arg5: memref<1x256xf32, #tpu.memory_space<vmem>>, %arg6: memref<256x128xbf16, #tpu.memory_space<vmem>>, %arg7: memref<1x128xf32, #tpu.memory_space<vmem>>, %arg8: memref<16x128xbf16, #tpu.memory_space<vmem>>) attributes {dimension_semantics = [#tpu.dimension_semantics<parallel>], iteration_bounds = array<i64: 1>, scalar_prefetch = 0 : i64, scratch_operands = 0 : i64, tpu.core_type = #tpu.core_type<tc>, window_params = [{transform_indices = @transform_0, window_bounds = array<i64: 16, 32>}, {pipeline_mode = #tpu.pipeline_mode<synchronous>, transform_indices = @transform_1, window_bounds = array<i64: 32, 128>}, {pipeline_mode = #tpu.pipeline_mode<synchronous>, transform_indices = @transform_2, window_bounds = array<i64: 1, 128>}, {pipeline_mode = #tpu.pipeline_mode<synchronous>, transform_indices = @transform_3, window_bounds = array<i64: 128, 256>}, {pipeline_mode = #tpu.pipeline_mode<synchronous>, transform_indices = @transform_4, window_bounds = array<i64: 1, 256>}, {pipeline_mode = #tpu.pipeline_mode<synchronous>, transform_indices = @transform_5, window_bounds = array<i64: 256, 128>}, {pipeline_mode = #tpu.pipeline_mode<synchronous>, transform_indices = @transform_6, window_bounds = array<i64: 1, 128>}, {transform_indices = @transform_7, window_bounds = array<i64: 16, 128>}]} {
    %c0 = arith.constant 0 : index
    %c0_0 = arith.constant 0 : index
    %0 = vector.load %arg1[%c0, %c0_0] : memref<16x32xf32, #tpu.memory_space<vmem>>, vector<16x32xf32>
    %1 = arith.truncf %0 : vector<16x32xf32> to vector<16x32xbf16>
    %c0_1 = arith.constant 0 : index
    %c0_2 = arith.constant 0 : index
    %2 = vector.load %arg2[%c0_1, %c0_2] : memref<32x128xbf16, #tpu.memory_space<vmem>>, vector<32x128xbf16>
    %cst = arith.constant dense<0.000000e+00> : vector<16x128xf32>
    %3 = tpu.matmul %1, %2, %cst {dimension_numbers = #tpu.dot_dimension_numbers<[1], [0], [0], [1], [0, 0, 1, 1], [], []>} : vector<16x32xbf16>, vector<32x128xbf16>, vector<16x128xf32> -> vector<16x128xf32>
    %c0_3 = arith.constant 0 : index
    %c0_4 = arith.constant 0 : index
    %4 = vector.load %arg3[%c0_3, %c0_4] : memref<1x128xf32, #tpu.memory_space<vmem>>, vector<1x128xf32>
    %5 = vector.broadcast %4 : vector<1x128xf32> to vector<16x128xf32>
    %6 = arith.addf %3, %5 : vector<16x128xf32>
    %cst_5 = arith.constant 0.000000e+00 : f32
    %7 = vector.broadcast %cst_5 : f32 to vector<16x128xf32>
    %8 = arith.maximumf %6, %7 : vector<16x128xf32>
    %9 = arith.truncf %8 : vector<16x128xf32> to vector<16x128xbf16>
    %c0_6 = arith.constant 0 : index
    %c0_7 = arith.constant 0 : index
    %10 = vector.load %arg4[%c0_6, %c0_7] : memref<128x256xbf16, #tpu.memory_space<vmem>>, vector<128x256xbf16>
    %cst_8 = arith.constant dense<0.000000e+00> : vector<16x256xf32>
    %11 = tpu.matmul %9, %10, %cst_8 {dimension_numbers = #tpu.dot_dimension_numbers<[1], [0], [0], [1], [0, 0, 1, 1], [], []>} : vector<16x128xbf16>, vector<128x256xbf16>, vector<16x256xf32> -> vector<16x256xf32>
    %c0_9 = arith.constant 0 : index
    %c0_10 = arith.constant 0 : index
    %12 = vector.load %arg5[%c0_9, %c0_10] : memref<1x256xf32, #tpu.memory_space<vmem>>, vector<1x256xf32>
    %13 = vector.broadcast %12 : vector<1x256xf32> to vector<16x256xf32>
    %14 = arith.addf %11, %13 : vector<16x256xf32>
    %cst_11 = arith.constant 0.000000e+00 : f32
    %15 = vector.broadcast %cst_11 : f32 to vector<16x256xf32>
    %16 = arith.maximumf %14, %15 : vector<16x256xf32>
    %17 = arith.truncf %16 : vector<16x256xf32> to vector<16x256xbf16>
    %c0_12 = arith.constant 0 : index
    %c0_13 = arith.constant 0 : index
    %18 = vector.load %arg6[%c0_12, %c0_13] : memref<256x128xbf16, #tpu.memory_space<vmem>>, vector<256x128xbf16>
    %cst_14 = arith.constant dense<0.000000e+00> : vector<16x128xf32>
    %19 = tpu.matmul %17, %18, %cst_14 {dimension_numbers = #tpu.dot_dimension_numbers<[1], [0], [0], [1], [0, 0, 1, 1], [], []>} : vector<16x256xbf16>, vector<256x128xbf16>, vector<16x128xf32> -> vector<16x128xf32>
    %c0_15 = arith.constant 0 : index
    %c0_16 = arith.constant 0 : index
    %20 = vector.load %arg7[%c0_15, %c0_16] : memref<1x128xf32, #tpu.memory_space<vmem>>, vector<1x128xf32>
    %21 = vector.broadcast %20 : vector<1x128xf32> to vector<16x128xf32>
    %22 = arith.addf %19, %21 : vector<16x128xf32>
    %23 = arith.truncf %22 : vector<16x128xf32> to vector<16x128xbf16>
    %c0_17 = arith.constant 0 : index
    %c0_18 = arith.constant 0 : index
    %24 = vector.load %arg8[%c0_17, %c0_18] : memref<16x128xbf16, #tpu.memory_space<vmem>>, vector<16x128xbf16>
    tpu.vector_store %arg8[%c0_17, %c0_18], %23 {strides = array<i32>} : memref<16x128xbf16, #tpu.memory_space<vmem>>, vector<16x128xbf16>,
    return
  }
  func.func @transform_0(%arg0: i32) -> (i32, i32) {
    %c0_i32 = arith.constant 0 : i32
    %c0_i32_0 = arith.constant 0 : i32
    return %arg0, %c0_i32 : i32, i32
  }
  func.func @transform_1(%arg0: i32) -> (i32, i32) {
    %c0_i32 = arith.constant 0 : i32
    %c0_i32_0 = arith.constant 0 : i32
    %c0_i32_1 = arith.constant 0 : i32
    return %c0_i32, %c0_i32_0 : i32, i32
  }
  func.func @transform_2(%arg0: i32) -> (i32, i32) {
    %c0_i32 = arith.constant 0 : i32
    %c0_i32_0 = arith.constant 0 : i32
    %c0_i32_1 = arith.constant 0 : i32
    return %c0_i32, %c0_i32_0 : i32, i32
  }
  func.func @transform_3(%arg0: i32) -> (i32, i32) {
    %c0_i32 = arith.constant 0 : i32
    %c0_i32_0 = arith.constant 0 : i32
    %c0_i32_1 = arith.constant 0 : i32
    return %c0_i32, %c0_i32_0 : i32, i32
  }
  func.func @transform_4(%arg0: i32) -> (i32, i32) {
    %c0_i32 = arith.constant 0 : i32
    %c0_i32_0 = arith.constant 0 : i32
    %c0_i32_1 = arith.constant 0 : i32
    return %c0_i32, %c0_i32_0 : i32, i32
  }
  func.func @transform_5(%arg0: i32) -> (i32, i32) {
    %c0_i32 = arith.constant 0 : i32
    %c0_i32_0 = arith.constant 0 : i32
    %c0_i32_1 = arith.constant 0 : i32
    return %c0_i32, %c0_i32_0 : i32, i32
  }
  func.func @transform_6(%arg0: i32) -> (i32, i32) {
    %c0_i32 = arith.constant 0 : i32
    %c0_i32_0 = arith.constant 0 : i32
    %c0_i32_1 = arith.constant 0 : i32
    return %c0_i32, %c0_i32_0 : i32, i32
  }
  func.func @transform_7(%arg0: i32) -> (i32, i32) {
    %c0_i32 = arith.constant 0 : i32
    %c0_i32_0 = arith.constant 0 : i32
    return %arg0, %c0_i32 : i32, i32
  }
}

</mosaic_0001>

<llo_original>
// kernel: dqn_forward.1
$region0: #{dqn_forward.1}
  #allocation0 [shape = 'u32[]', space=smem, size = 0x4, offset = 0x4, fixed_abs, tag = 'smem constant byte address 0x4 - core index']
  #allocation1 [shape = 'u32[144,128]{1,0:T(1,128)}', space=vmem, size = 0x12000, scoped, tag = 'internal scratch']
  %s0 = inlined_call_operand.hbm [shape: f32[16,32], index: 0, kind: input, shape index: {}]
  %s1 = inlined_call_operand.hbm [shape: bf16[32,128], index: 1, kind: input, shape index: {}]
  %s2 = inlined_call_operand.vmem [shape: f32[1,128], index: 2, kind: input, shape index: {}]
  %s3 = inlined_call_operand.hbm [shape: bf16[128,256], index: 3, kind: input, shape index: {}]
  %s4 = inlined_call_operand.vmem [shape: f32[1,256], index: 4, kind: input, shape index: {}]
  %s5 = inlined_call_operand.hbm [shape: bf16[256,128], index: 5, kind: input, shape index: {}]
  %s6 = inlined_call_operand.vmem [shape: f32[1,128], index: 6, kind: input, shape index: {}]
  %s7 = inlined_call_operand.vmem [shape: bf16[16,128], index: 7, kind: output, shape index: {}]
  %s8 = sld [smem:[#allocation0]]
  $region54: #{dqn_forward.1} parent=0
    _
  %s10 = ssub.s32 1, %s8
  %s11 = scalar_select 0, %s10, %s8
  $region1: #{dqn_forward.1} parent=0
    #allocation2 [shape = 'u8[8192]{0}', space=vmem, size = 0x2000, scoped, tag = 'input window, operand 0, single buffered']
    #allocation3 [shape = 's32[1]{0}', space=sflag, size = 0x4, scoped, tag = 'scoped memory for dqn_forward.1']
    #allocation4 [shape = 'u8[8192]{0}', space=vmem, size = 0x2000, scoped, tag = 'input window, operand 1, single buffered']
    #allocation5 [shape = 's32[1]{0}', space=sflag, size = 0x4, scoped, tag = 'scoped memory for dqn_forward.1']
    #allocation6 [shape = 'u8[65536]{0}', space=vmem, size = 0x10000, scoped, tag = 'input window, operand 3, single buffered']
    #allocation7 [shape = 'u8[65536]{0}', space=vmem, size = 0x10000, scoped, tag = 'input window, operand 5, single buffered']
    #allocation8 [shape = 's32[1]{0}', space=sflag, size = 0x4, scoped, tag = 'scoped memory for dqn_forward.1']
    %12 = vsyncpa [#allocation3], 0
    %13 = vsyncpa [#allocation5], 0
    %14 = vsyncpa [#allocation8], 0
    // Predicated region
    $region2: #{dqn_forward.1} parent=1 // pred_check
      _
    $region3: #{dqn_forward.1} parent=1 // pred_check_branch
      %16 = sbr.rel (0) target = $region5
    $region4: #{dqn_forward.1} parent=1 // pred_region
      %s18 = ssub.s32 256, 256
      %19 = vsyncadd [#allocation3], %s18
      %s20 = sshll.u32 [#allocation2], 4
      %s21 = int_to_ptr.vmem [resolvable:$true] %s20
      %26 = dma.hbm_to_vmem [thread:$0]  %s0, 256, %s21, [#allocation3], 128, 128, 8
    $region5: #{dqn_forward.1} parent=1 // pred_fallthru
      _
    // Predicated region
    $region6: #{dqn_forward.1} parent=1 // pred_check
      _
    $region7: #{dqn_forward.1} parent=1 // pred_check_branch
      %28 = sbr.rel (0) target = $region9
    $region8: #{dqn_forward.1} parent=1 // pred_region
      %s30 = ssub.s32 256, 256
      %31 = vsyncadd [#allocation5], %s30
      %s32 = sshll.u32 [#allocation4], 4
      %s33 = int_to_ptr.vmem [resolvable:$true] %s32
      %38 = dma.hbm_to_vmem [thread:$0]  %s1, 256, %s33, [#allocation5], 64, 64, 4
    $region9: #{dqn_forward.1} parent=1 // pred_fallthru
      _
    // Predicated region
    $region10: #{dqn_forward.1} parent=1 // pred_check
      _
    $region11: #{dqn_forward.1} parent=1 // pred_check_branch
      %40 = sbr.rel (0) target = $region13
    $region12: #{dqn_forward.1} parent=1 // pred_region
      _
    $region13: #{dqn_forward.1} parent=1 // pred_fallthru
      _
    // Predicated region
    $region14: #{dqn_forward.1} parent=1 // pred_check
      _
    $region15: #{dqn_forward.1} parent=1 // pred_check_branch
      %42 = sbr.rel (0) target = $region17
    $region16: #{dqn_forward.1} parent=1 // pred_region
      %s44 = ssub.s32 2048, 2048
      %45 = vsyncadd [#allocation5], %s44
      %s46 = sshll.u32 [#allocation6], 4
      %s47 = int_to_ptr.vmem [resolvable:$true] %s46
      %52 = dma.hbm_to_vmem [thread:$0]  %s3, 2048, %s47, [#allocation5], 128, 128, 8
    $region17: #{dqn_forward.1} parent=1 // pred_fallthru
      _
    // Predicated region
    $region18: #{dqn_forward.1} parent=1 // pred_check
      _
    $region19: #{dqn_forward.1} parent=1 // pred_check_branch
      %54 = sbr.rel (0) target = $region21
    $region20: #{dqn_forward.1} parent=1 // pred_region
      _
    $region21: #{dqn_forward.1} parent=1 // pred_fallthru
      _
    // Predicated region
    $region22: #{dqn_forward.1} parent=1 // pred_check
      _
    $region23: #{dqn_forward.1} parent=1 // pred_check_branch
      %56 = sbr.rel (0) target = $region25
    $region24: #{dqn_forward.1} parent=1 // pred_region
      %s58 = ssub.s32 2048, 2048
      %59 = vsyncadd [#allocation8], %s58
      %s60 = sshll.u32 [#allocation7], 4
      %s61 = int_to_ptr.vmem [resolvable:$true] %s60
      %66 = dma.hbm_to_vmem [thread:$0]  %s5, 2048, %s61, [#allocation8], 64, 64, 4
    $region25: #{dqn_forward.1} parent=1 // pred_fallthru
      _
    // Predicated region
    $region26: #{dqn_forward.1} parent=1 // pred_check
      _
    $region27: #{dqn_forward.1} parent=1 // pred_check_branch
      %68 = sbr.rel (0) target = $region29
    $region28: #{dqn_forward.1} parent=1 // pred_region
      _
    $region29: #{dqn_forward.1} parent=1 // pred_fallthru
      _
    // Predicated region
    $region30: #{dqn_forward.1} parent=1 // pred_check
      _
    $region31: #{dqn_forward.1} parent=1 // pred_check_branch
      %70 = sbr.rel (0) target = $region33
    $region32: #{dqn_forward.1} parent=1 // pred_region
      %71 = dma.done [#allocation3], 256
    $region33: #{dqn_forward.1} parent=1 // pred_fallthru
      _
    // Predicated region
    $region34: #{dqn_forward.1} parent=1 // pred_check
      _
    $region35: #{dqn_forward.1} parent=1 // pred_check_branch
      %73 = sbr.rel (0) target = $region37
    $region36: #{dqn_forward.1} parent=1 // pred_region
      %74 = dma.done [#allocation5], 256
    $region37: #{dqn_forward.1} parent=1 // pred_fallthru
      _
    // Predicated region
    $region38: #{dqn_forward.1} parent=1 // pred_check
      _
    $region39: #{dqn_forward.1} parent=1 // pred_check_branch
      %76 = sbr.rel (0) target = $region41
    $region40: #{dqn_forward.1} parent=1 // pred_region
      %77 = dma.done [#allocation5], 2048
    $region41: #{dqn_forward.1} parent=1 // pred_fallthru
      _
    // Predicated region
    $region42: #{dqn_forward.1} parent=1 // pred_check
      _
    $region43: #{dqn_forward.1} parent=1 // pred_check_branch
      %79 = sbr.rel (0) target = $region45
    $region44: #{dqn_forward.1} parent=1 // pred_region
      %80 = dma.done [#allocation8], 2048
    $region45: #{dqn_forward.1} parent=1 // pred_fallthru
      _
    %v82 = vld [vmem:[#allocation2] sm:$0xff]
    %v83 = vld [vmem:[#allocation2 + $0x8] sm:$0xff]
    %v84 = vpack.c.bf16 %v83, %v82
    %v85 = vld [vmem:[#allocation4] sm:$0xf]
    %v86 = vld [vmem:[#allocation4 + $0x4] sm:$0xf]
    %v87 = vld [vmem:[#allocation4 + $0x8] sm:$0xf]
    %v88 = vld [vmem:[#allocation4 + $0xc] sm:$0xf]
    %v89 = vld [vmem:[%s2] sm:$0x1]
    %v91 = vlaneseq
    %v92 = vshrl.u32 %v91, 7
    %v93 = vsub.s32 0, %v92
    %v94 = vrot.slane %v89, %v93
    %v100 = vunpack.c.l.b16 %v85
    %v101 = vunpack.c.l.b16 %v86
    %v102 = vunpack.c.l.b16 %v87
    %v103 = vunpack.c.l.b16 %v88
    %v104 = vpack.c.b16 %v101, %v100
    %v105 = vpack.c.b16 %v103, %v102
    %vm108 = vcmask 261120
    %v110 = vsel %vm108, %v84, 0
    %112 = vmatprep.subr.bf16.mxu0 0
    %113 = vmatpush1.bf16.msra.mxu0 %v104
    %114 = vmatprep.subr.bf16.mxu0 0
    %115 = vmatpush1.bf16.msra.mxu0 %v105
    %116 = vmatprep.subr.bf16.mxu0 0
    %117 = vmatpush1.bf16.msra.mxu0 0
    %118 = vmatprep.subr.bf16.mxu0 0
    %119 = vmatpush1.bf16.msra.mxu0 0
    %120 = vmatprep.subr.bf16.mxu0 0
    %121 = vmatpush1.bf16.msra.mxu0 0
    %122 = vmatprep.subr.bf16.mxu0 0
    %123 = vmatpush1.bf16.msra.mxu0 0
    %124 = vmatprep.subr.bf16.mxu0 0
    %125 = vmatpush1.bf16.msra.mxu0 0
    %126 = vmatprep.subr.bf16.mxu0 0
    %127 = vmatpush1.bf16.msra.mxu0 0
    %128 = vmatprep.subr.bf16.mxu0 0
    %129 = vmatpush1.bf16.msra.mxu0 0
    %130 = vmatprep.subr.bf16.mxu0 0
    %131 = vmatpush1.bf16.msra.mxu0 0
    %132 = vmatprep.subr.bf16.mxu0 0
    %133 = vmatpush1.bf16.msra.mxu0 0
    %134 = vmatprep.subr.bf16.mxu0 0
    %135 = vmatpush1.bf16.msra.mxu0 0
    %136 = vmatprep.subr.bf16.mxu0 0
    %137 = vmatpush1.bf16.msra.mxu0 0
    %138 = vmatprep.subr.bf16.mxu0 0
    %139 = vmatpush1.bf16.msra.mxu0 0
    %140 = vmatprep.subr.bf16.mxu0 0
    %141 = vmatpush1.bf16.msra.mxu0 0
    %142 = vmatprep.subr.bf16.mxu0 0
    %143 = vmatpush1.bf16.msra.mxu0 0
    %144 = vmatprep.mubr.bf16.mxu0 0
    %145 = vmatmul.mubr.bf16.gmra.mrb[0].mxu0 %v110
    %v146 = vpop.f32.mrb[0].mxu0
    %v147 = vadd.f32 %v94, %v146
    %v148 = vpop.f32.mrb[0].mxu0
    %v149 = vpop.f32.mrb[0].mxu0
    %v150 = vadd.f32 %v94, %v149
    %v151 = vpop.f32.mrb[0].mxu0
    %152 = vdwg.mxu0
    %v153 = vmax.f32 %v147, 0.0
    %v154 = vmax.f32 %v150, 0.0
    %v155 = vpack.c.bf16 %v154, %v153
    %v156 = vld [vmem:[#allocation6] sm:$0xff]
    %v157 = vld [vmem:[#allocation6 + $0x8] sm:$0xff]
    %v158 = vld [vmem:[#allocation6 + $0x10] sm:$0xff]
    %v159 = vld [vmem:[#allocation6 + $0x18] sm:$0xff]
    %v160 = vld [vmem:[#allocation6 + $0x20] sm:$0xff]
    %v161 = vld [vmem:[#allocation6 + $0x28] sm:$0xff]
    %v162 = vld [vmem:[#allocation6 + $0x30] sm:$0xff]
    %v163 = vld [vmem:[#allocation6 + $0x38] sm:$0xff]
    %v164 = vld [vmem:[#allocation6 + $0x40] sm:$0xff]
    %v165 = vld [vmem:[#allocation6 + $0x48] sm:$0xff]
    %v166 = vld [vmem:[#allocation6 + $0x50] sm:$0xff]
    %v167 = vld [vmem:[#allocation6 + $0x58] sm:$0xff]
    %v168 = vld [vmem:[#allocation6 + $0x60] sm:$0xff]
    %v169 = vld [vmem:[#allocation6 + $0x68] sm:$0xff]
    %v170 = vld [vmem:[#allocation6 + $0x70] sm:$0xff]
    %v171 = vld [vmem:[#allocation6 + $0x78] sm:$0xff]
    %v172 = vld [vmem:[%s4] sm:$0x3]
    %v174 = vlaneseq
    %v175 = vshrl.u32 %v174, 7
    %v176 = vsub.s32 0, %v175
    %v177 = vrot.slane %v172, %v176
    %v178 = vlaneseq
    %v179 = vshrl.u32 %v178, 7
    %v180 = vsub.s32 1, %v179
    %v181 = vrot.slane %v172, %v180
    %v200 = vunpack.c.l.b16 %v156
    %v201 = vunpack.c.h.b16 %v156
    %v202 = vunpack.c.l.b16 %v157
    %v203 = vunpack.c.h.b16 %v157
    %v204 = vunpack.c.l.b16 %v158
    %v205 = vunpack.c.h.b16 %v158
    %v206 = vunpack.c.l.b16 %v159
    %v207 = vunpack.c.h.b16 %v159
    %v208 = vunpack.c.l.b16 %v160
    %v209 = vunpack.c.h.b16 %v160
    %v210 = vunpack.c.l.b16 %v161
    %v211 = vunpack.c.h.b16 %v161
    %v212 = vunpack.c.l.b16 %v162
    %v213 = vunpack.c.h.b16 %v162
    %v214 = vunpack.c.l.b16 %v163
    %v215 = vunpack.c.h.b16 %v163
    %v216 = vunpack.c.l.b16 %v164
    %v217 = vunpack.c.h.b16 %v164
    %v218 = vunpack.c.l.b16 %v165
    %v219 = vunpack.c.h.b16 %v165
    %v220 = vunpack.c.l.b16 %v166
    %v221 = vunpack.c.h.b16 %v166
    %v222 = vunpack.c.l.b16 %v167
    %v223 = vunpack.c.h.b16 %v167
    %v224 = vunpack.c.l.b16 %v168
    %v225 = vunpack.c.h.b16 %v168
    %v226 = vunpack.c.l.b16 %v169
    %v227 = vunpack.c.h.b16 %v169
    %v228 = vunpack.c.l.b16 %v170
    %v229 = vunpack.c.h.b16 %v170
    %v230 = vunpack.c.l.b16 %v171
    %v231 = vunpack.c.h.b16 %v171
    %v232 = vpack.c.b16 %v202, %v200
    %v233 = vpack.c.b16 %v203, %v201
    %v234 = vpack.c.b16 %v206, %v204
    %v235 = vpack.c.b16 %v207, %v205
    %v236 = vpack.c.b16 %v210, %v208
    %v237 = vpack.c.b16 %v211, %v209
    %v238 = vpack.c.b16 %v214, %v212
    %v239 = vpack.c.b16 %v215, %v213
    %v240 = vpack.c.b16 %v218, %v216
    %v241 = vpack.c.b16 %v219, %v217
    %v242 = vpack.c.b16 %v222, %v220
    %v243 = vpack.c.b16 %v223, %v221
    %v244 = vpack.c.b16 %v226, %v224
    %v245 = vpack.c.b16 %v227, %v225
    %v246 = vpack.c.b16 %v230, %v228
    %v247 = vpack.c.b16 %v231, %v229
    %264 = vmatprep.subr.bf16.mxu0 %v233
    %265 = vmatpush1.bf16.msra.mxu0 %v232
    %266 = vmatprep.subr.bf16.mxu0 %v235
    %267 = vmatpush1.bf16.msra.mxu0 %v234
    %268 = vmatprep.subr.bf16.mxu0 %v237
    %269 = vmatpush1.bf16.msra.mxu0 %v236
    %270 = vmatprep.subr.bf16.mxu0 %v239
    %271 = vmatpush1.bf16.msra.mxu0 %v238
    %272 = vmatprep.subr.bf16.mxu0 %v241
    %273 = vmatpush1.bf16.msra.mxu0 %v240
    %274 = vmatprep.subr.bf16.mxu0 %v243
    %275 = vmatpush1.bf16.msra.mxu0 %v242
    %276 = vmatprep.subr.bf16.mxu0 %v245
    %277 = vmatpush1.bf16.msra.mxu0 %v244
    %278 = vmatprep.subr.bf16.mxu0 %v247
    %279 = vmatpush1.bf16.msra.mxu0 %v246
    %280 = vmatprep.subr.bf16.mxu0 0
    %281 = vmatpush1.bf16.msra.mxu0 0
    %282 = vmatprep.subr.bf16.mxu0 0
    %283 = vmatpush1.bf16.msra.mxu0 0
    %284 = vmatprep.subr.bf16.mxu0 0
    %285 = vmatpush1.bf16.msra.mxu0 0
    %286 = vmatprep.subr.bf16.mxu0 0
    %287 = vmatpush1.bf16.msra.mxu0 0
    %288 = vmatprep.subr.bf16.mxu0 0
    %289 = vmatpush1.bf16.msra.mxu0 0
    %290 = vmatprep.subr.bf16.mxu0 0
    %291 = vmatpush1.bf16.msra.mxu0 0
    %292 = vmatprep.subr.bf16.mxu0 0
    %293 = vmatpush1.bf16.msra.mxu0 0
    %294 = vmatprep.subr.bf16.mxu0 0
    %295 = vmatpush1.bf16.msra.mxu0 0
    %296 = vmatprep.mubr.bf16.mxu0 0
    %297 = vmatmul.mubr.bf16.gmra.mrb[0].mxu0 %v155
    %v298 = vpop.f32.mrb[0].mxu0
    %v299 = vadd.f32 %v177, %v298
    %v300 = vpop.f32.mrb[0].mxu0
    %v301 = vadd.f32 %v181, %v300
    %v302 = vpop.f32.mrb[0].mxu0
    %v303 = vadd.f32 %v177, %v302
    %v304 = vpop.f32.mrb[0].mxu0
    %v305 = vadd.f32 %v181, %v304
    %306 = vdwg.mxu0
    %v307 = vmax.f32 %v299, 0.0
    %v308 = vmax.f32 %v301, 0.0
    %v309 = vmax.f32 %v303, 0.0
    %v310 = vmax.f32 %v305, 0.0
    %v311 = vpack.c.bf16 %v309, %v307
    %v312 = vpack.c.bf16 %v310, %v308
    %v313 = vld [vmem:[#allocation7] sm:$0xf]
    %v314 = vld [vmem:[#allocation7 + $0x4] sm:$0xf]
    %v315 = vld [vmem:[#allocation7 + $0x8] sm:$0xf]
    %v316 = vld [vmem:[#allocation7 + $0xc] sm:$0xf]
    %v317 = vld [vmem:[#allocation7 + $0x10] sm:$0xf]
    %v318 = vld [vmem:[#allocation7 + $0x14] sm:$0xf]
    %v319 = vld [vmem:[#allocation7 + $0x18] sm:$0xf]
    %v320 = vld [vmem:[#allocation7 + $0x1c] sm:$0xf]
    %v321 = vld [vmem:[#allocation7 + $0x20] sm:$0xf]
    %v322 = vld [vmem:[#allocation7 + $0x24] sm:$0xf]
    %v323 = vld [vmem:[#allocation7 + $0x28] sm:$0xf]
    %v324 = vld [vmem:[#allocation7 + $0x2c] sm:$0xf]
    %v325 = vld [vmem:[#allocation7 + $0x30] sm:$0xf]
    %v326 = vld [vmem:[#allocation7 + $0x34] sm:$0xf]
    %v327 = vld [vmem:[#allocation7 + $0x38] sm:$0xf]
    %v328 = vld [vmem:[#allocation7 + $0x3c] sm:$0xf]
    %v329 = vld [vmem:[#allocation7 + $0x40] sm:$0xf]
    %v330 = vld [vmem:[#allocation7 + $0x44] sm:$0xf]
    %v331 = vld [vmem:[#allocation7 + $0x48] sm:$0xf]
    %v332 = vld [vmem:[#allocation7 + $0x4c] sm:$0xf]
    %v333 = vld [vmem:[#allocation7 + $0x50] sm:$0xf]
    %v334 = vld [vmem:[#allocation7 + $0x54] sm:$0xf]
    %v335 = vld [vmem:[#allocation7 + $0x58] sm:$0xf]
    %v336 = vld [vmem:[#allocation7 + $0x5c] sm:$0xf]
    %v337 = vld [vmem:[#allocation7 + $0x60] sm:$0xf]
    %v338 = vld [vmem:[#allocation7 + $0x64] sm:$0xf]
    %v339 = vld [vmem:[#allocation7 + $0x68] sm:$0xf]
    %v340 = vld [vmem:[#allocation7 + $0x6c] sm:$0xf]
    %v341 = vld [vmem:[#allocation7 + $0x70] sm:$0xf]
    %v342 = vld [vmem:[#allocation7 + $0x74] sm:$0xf]
    %v343 = vld [vmem:[#allocation7 + $0x78] sm:$0xf]
    %v344 = vld [vmem:[#allocation7 + $0x7c] sm:$0xf]
    %v345 = vld [vmem:[%s6] sm:$0x1]
    %v347 = vlaneseq
    %v348 = vshrl.u32 %v347, 7
    %v349 = vsub.s32 0, %v348
    %v350 = vrot.slane %v345, %v349
    %v384 = vunpack.c.l.b16 %v313
    %v385 = vunpack.c.l.b16 %v314
    %v386 = vunpack.c.l.b16 %v315
    %v387 = vunpack.c.l.b16 %v316
    %v388 = vunpack.c.l.b16 %v317
    %v389 = vunpack.c.l.b16 %v318
    %v390 = vunpack.c.l.b16 %v319
    %v391 = vunpack.c.l.b16 %v320
    %v392 = vunpack.c.l.b16 %v321
    %v393 = vunpack.c.l.b16 %v322
    %v394 = vunpack.c.l.b16 %v323
    %v395 = vunpack.c.l.b16 %v324
    %v396 = vunpack.c.l.b16 %v325
    %v397 = vunpack.c.l.b16 %v326
    %v398 = vunpack.c.l.b16 %v327
    %v399 = vunpack.c.l.b16 %v328
    %v400 = vunpack.c.l.b16 %v329
    %v401 = vunpack.c.l.b16 %v330
    %v402 = vunpack.c.l.b16 %v331
    %v403 = vunpack.c.l.b16 %v332
    %v404 = vunpack.c.l.b16 %v333
    %v405 = vunpack.c.l.b16 %v334
    %v406 = vunpack.c.l.b16 %v335
    %v407 = vunpack.c.l.b16 %v336
    %v408 = vunpack.c.l.b16 %v337
    %v409 = vunpack.c.l.b16 %v338
    %v410 = vunpack.c.l.b16 %v339
    %v411 = vunpack.c.l.b16 %v340
    %v412 = vunpack.c.l.b16 %v341
    %v413 = vunpack.c.l.b16 %v342
    %v414 = vunpack.c.l.b16 %v343
    %v415 = vunpack.c.l.b16 %v344
    %v416 = vpack.c.b16 %v385, %v384
    %v417 = vpack.c.b16 %v387, %v386
    %v418 = vpack.c.b16 %v389, %v388
    %v419 = vpack.c.b16 %v391, %v390
    %v420 = vpack.c.b16 %v393, %v392
    %v421 = vpack.c.b16 %v395, %v394
    %v422 = vpack.c.b16 %v397, %v396
    %v423 = vpack.c.b16 %v399, %v398
    %v424 = vpack.c.b16 %v401, %v400
    %v425 = vpack.c.b16 %v403, %v402
    %v426 = vpack.c.b16 %v405, %v404
    %v427 = vpack.c.b16 %v407, %v406
    %v428 = vpack.c.b16 %v409, %v408
    %v429 = vpack.c.b16 %v411, %v410
    %v430 = vpack.c.b16 %v413, %v412
    %v431 = vpack.c.b16 %v415, %v414
    %448 = vmatprep.subr.bf16.mxu0 0
    %449 = vmatpush1.bf16.msra.mxu0 %v416
    %450 = vmatprep.subr.bf16.mxu0 0
    %451 = vmatpush1.bf16.msra.mxu0 %v417
    %452 = vmatprep.subr.bf16.mxu0 0
    %453 = vmatpush1.bf16.msra.mxu0 %v418
    %454 = vmatprep.subr.bf16.mxu0 0
    %455 = vmatpush1.bf16.msra.mxu0 %v419
    %456 = vmatprep.subr.bf16.mxu0 0
    %457 = vmatpush1.bf16.msra.mxu0 %v420
    %458 = vmatprep.subr.bf16.mxu0 0
    %459 = vmatpush1.bf16.msra.mxu0 %v421
    %460 = vmatprep.subr.bf16.mxu0 0
    %461 = vmatpush1.bf16.msra.mxu0 %v422
    %462 = vmatprep.subr.bf16.mxu0 0
    %463 = vmatpush1.bf16.msra.mxu0 %v423
    %464 = vmatprep.subr.bf16.mxu0 0
    %465 = vmatpush1.bf16.msra.mxu0 %v424
    %466 = vmatprep.subr.bf16.mxu0 0
    %467 = vmatpush1.bf16.msra.mxu0 %v425
    %468 = vmatprep.subr.bf16.mxu0 0
    %469 = vmatpush1.bf16.msra.mxu0 %v426
    %470 = vmatprep.subr.bf16.mxu0 0
    %471 = vmatpush1.bf16.msra.mxu0 %v427
    %472 = vmatprep.subr.bf16.mxu0 0
    %473 = vmatpush1.bf16.msra.mxu0 %v428
    %474 = vmatprep.subr.bf16.mxu0 0
    %475 = vmatpush1.bf16.msra.mxu0 %v429
    %476 = vmatprep.subr.bf16.mxu0 0
    %477 = vmatpush1.bf16.msra.mxu0 %v430
    %478 = vmatprep.subr.bf16.mxu0 0
    %479 = vmatpush1.bf16.msra.mxu0 %v431
    %480 = vmatprep.mubr.bf16.mxu0 %v312
    %481 = vmatmul.mubr.bf16.gmra.mrb[0].mxu0 %v311
    %v482 = vpop.f32.mrb[0].mxu0
    %v483 = vadd.f32 %v350, %v482
    %v484 = vpop.f32.mrb[0].mxu0
    %v485 = vpop.f32.mrb[0].mxu0
    %v486 = vadd.f32 %v350, %v485
    %v487 = vpop.f32.mrb[0].mxu0
    %488 = vdwg.mxu0
    %v489 = vpack.c.bf16 %v486, %v483
    %v491 = vunpack.c.l.b16 %v489
    %v492 = vunpack.c.h.b16 %v489
    %v493 = vpack.c.b16 %v491, %v491
    %v494 = vpack.c.b16 %v492, %v492
    %497 = vst [vmem:[%s7] sm:$0xf] %v493
    %498 = vst [vmem:[%s7 + $0x4] sm:$0xf] %v494
    // Predicated region
    $region46: #{dqn_forward.1} parent=1 // pred_check
      _
    $region47: #{dqn_forward.1} parent=1 // pred_check_branch
      %500 = sbr.rel (0) target = $region49
    $region48: #{dqn_forward.1} parent=1 // pred_region
      _
    $region49: #{dqn_forward.1} parent=1 // pred_fallthru
      _
    // Predicated region
    $region50: #{dqn_forward.1} parent=1 // pred_check
      _
    $region51: #{dqn_forward.1} parent=1 // pred_check_branch
      %502 = sbr.rel (0) target = $region53
    $region52: #{dqn_forward.1} parent=1 // pred_region
      _
    $region53: #{dqn_forward.1} parent=1 // pred_fallthru
      _
    %503 = vsyncpa [#allocation3], 1
    %504 = vsyncpa [#allocation5], 1
    %505 = vsyncpa [#allocation8], 1

</llo_original>
